<compile_context>
chip_gen: v5e
topology: v5e:2x2
jax: 0.10.0
libtpu: 0.0.40
codegen_flags: <defaults>
</compile_context>

<pallas_src>
import functools

import numpy as np
import jax
import jax.numpy as jnp
from jax import lax
from jax.experimental import pallas as pl
from jax.experimental.pallas import tpu as pltpu

BN_EPS = 1e-5


# ---------------------------------------------------------------------------
# Fused Pallas kernel
# ---------------------------------------------------------------------------
def _area_attention_kernel(x_ref, w1_ref, b1_ref, w2_ref, b2_ref, o_ref,
                           tpad_ref, *, H, W, pad):
    """Fused AreaAttention forward for one image.

    x_ref    : (C, H*W)          f32   input image (channels x flat spatial)
    w1_ref   : (Cr, C)           bf16  1x1 conv weight with BN scale folded in
    b1_ref   : (Cr, 1)           f32   folded conv1+BN bias
    w2_ref   : (9, Cr)           f32   3x3 conv weight, tap-major (k = 3*i + j)
    b2_ref   : (1,)              f32   conv2 bias (SMEM scalar)
    o_ref    : (C, H*W)          f32   gated output
    tpad_ref : (9, H*W + 2*pad)  f32   VMEM scratch for shifted-window reads
    """
    HW = H * W
    x = x_ref[...]                                            # (C, HW) f32

    # ---- conv1 (1x1) + folded BN + ReLU : MXU in bf16, f32 accumulate -----
    y1 = jnp.dot(w1_ref[...], x.astype(jnp.bfloat16),
                 preferred_element_type=jnp.float32)          # (Cr, HW)
    y1 = jnp.maximum(y1 + b1_ref[...], 0.0)                   # f32 epilogue

    # ---- conv2 (3x3, Cout=1): per-tap channel contraction as one matmul ---
    # t[k, p] = sum_c w2[k, c] * y1[c, p]   -> (9, HW), lane-dense, stays VMEM
    t = jnp.dot(w2_ref[...], y1, preferred_element_type=jnp.float32)

    # Place t in the middle of the padded scratch.  The pad region is never
    # written (contents irrelevant): any neighbour read that falls into it is
    # an out-of-image position and is masked to zero below.
    tpad_ref[:, pad:pad + HW] = t                             # lane-aligned store

    # Validity masks (computed once per image, flat spatial index).
    idx = lax.broadcasted_iota(jnp.int32, (1, HW), 1)
    col = idx % W
    row_ok = {-1: idx >= W, 0: None, 1: idx < HW - W}
    col_ok = {-1: col >= 1, 0: None, 1: col <= W - 2}

    # Shifted-window accumulation == 3x3 convolution with zero padding.
    logit = jnp.full((1, HW), b2_ref[0], jnp.float32)
    k = 0
    for oi in (-1, 0, 1):
        for oj in (-1, 0, 1):
            s = oi * W + oj
            win = tpad_ref[k:k + 1, pad + s:pad + s + HW]     # (1, HW)
            m = row_ok[oi]
            if col_ok[oj] is not None:
                m = col_ok[oj] if m is None else jnp.logical_and(m, col_ok[oj])
            logit = logit + (win if m is None else jnp.where(m, win, 0.0))
            k += 1

    att = jax.nn.sigmoid(logit)                               # (1, HW), f32, EUP

    # ---- gate: out = x * attention (broadcast over channels), dense store -
    o_ref[...] = x * att


# ---------------------------------------------------------------------------
# Wrapper
# ---------------------------------------------------------------------------
def area_attention(x_nchw, p):
    """AreaAttentionLayer forward. x_nchw: (N, C, H, W) f32 -> (N, C, H, W)."""
    N, C, H, W = x_nchw.shape
    Cr = p["w1f"].shape[0]
    HW = H * W
    pad = pl.cdiv(W + 1, 128) * 128              # lane-aligned flat spatial pad
    x_flat = x_nchw.reshape(N, C, HW)            # free reshape, stays NCHW

    out = pl.pallas_call(
        functools.partial(_area_attention_kernel, H=H, W=W, pad=pad),
        out_shape=jax.ShapeDtypeStruct((N, C, HW), jnp.float32),
        grid=(N,),
        in_specs=[
            pl.BlockSpec((None, C, HW), lambda n: (n, 0, 0)),     # x (per image)
            pl.BlockSpec((Cr, C), lambda n: (0, 0)),              # w1 (bf16, folded)
            pl.BlockSpec((Cr, 1), lambda n: (0, 0)),              # b1 (f32, folded)
            pl.BlockSpec((9, Cr), lambda n: (0, 0)),              # w2 taps
            pl.BlockSpec(memory_space=pltpu.MemorySpace.SMEM),    # b2 scalar
        ],
        out_specs=pl.BlockSpec((None, C, HW), lambda n: (n, 0, 0)),
        scratch_shapes=[pltpu.VMEM((9, HW + 2 * pad), jnp.float32)],
        compiler_params=pltpu.CompilerParams(
            dimension_semantics=("parallel",)),   # split batch across TCs
    )(x_flat, p["w1f"], p["b1f"], p["w2f"], p["b2"])
    return out.reshape(N, C, H, W)


# ---------------------------------------------------------------------------
# Pure-JAX reference (PyTorch eval-mode semantics, f32, un-folded BN)
# ---------------------------------------------------------------------------
def area_attention_ref(x, raw):
    N, C, H, W = x.shape
    z = jnp.einsum("rc,nchw->nrhw", raw["w1"], x) \
        + raw["b1_conv"][None, :, None, None]
    s = raw["gamma"] / jnp.sqrt(raw["var"] + BN_EPS)
    z = s[None, :, None, None] * (z - raw["mean"][None, :, None, None]) \
        + raw["beta"][None, :, None, None]
    y = jax.nn.relu(z)
    yp = jnp.pad(y, ((0, 0), (0, 0), (1, 1), (1, 1)))
    logit = jnp.full((N, H, W), raw["b2"][0], jnp.float32)
    for i in range(3):
        for j in range(3):
            logit = logit + jnp.einsum(
                "c,nchw->nhw", raw["w2"][i, j], yp[:, :, i:i + H, j:j + W])
    att = jax.nn.sigmoid(logit)
    return x * att[:, None, :, :]


# ---------------------------------------------------------------------------
# Deterministic synthetic parameters (+ eval-mode BN folding)
# ---------------------------------------------------------------------------
def init_params(key, C, reduction_ratio=8):
    Cr = C // reduction_ratio
    ks = jax.random.split(key, 8)
    w1 = jax.random.normal(ks[0], (Cr, C), jnp.float32) / np.sqrt(C)
    b1_conv = 0.05 * jax.random.normal(ks[1], (Cr,), jnp.float32)
    gamma = 1.0 + 0.2 * jax.random.normal(ks[2], (Cr,), jnp.float32)
    beta = 0.1 * jax.random.normal(ks[3], (Cr,), jnp.float32)
    mean = 0.2 * jax.random.normal(ks[4], (Cr,), jnp.float32)
    var = jax.random.uniform(ks[5], (Cr,), jnp.float32, 0.5, 1.5)
    w2 = jax.random.normal(ks[6], (3, 3, Cr), jnp.float32) / np.sqrt(9 * Cr)
    b2 = 0.05 * jax.random.normal(ks[7], (1,), jnp.float32)

    raw = dict(w1=w1, b1_conv=b1_conv, gamma=gamma, beta=beta,
               mean=mean, var=var, w2=w2, b2=b2)

    # Fold eval-mode BN into conv1:  s*(w1 x + b1 - mean) + beta
    s = gamma / jnp.sqrt(var + BN_EPS)
    folded = dict(
        w1f=(w1 * s[:, None]).astype(jnp.bfloat16),          # MXU operand
        b1f=(s * (b1_conv - mean) + beta).reshape(Cr, 1),     # f32 epilogue bias
        w2f=w2.reshape(9, Cr),                                # tap-major 3x3 weight
        b2=b2,                                                # SMEM scalar
    )
    return raw, folded


if __name__ == "__main__":
    key = jax.random.PRNGKey(0)
    kx, kp = jax.random.split(key)
    N, C, H, W = 2, 32, 16, 16                # channels must be >= reduction_ratio
    x = jax.random.normal(kx, (N, C, H, W), jnp.float32)
    raw, folded = init_params(kp, C)

    out = jax.jit(area_attention)(x, folded)
    out = jax.block_until_ready(out)

    ref = area_attention_ref(x, raw)
    err = float(jnp.max(jnp.abs(out - ref)))

    assert out.shape == (N, C, H, W) and out.dtype == jnp.float32
    assert err < 5e-2, f"max abs err {err}"
    print("KERNEL_OK")
</pallas_src>

<mosaic_0001>
module attributes {stable_mosaic.version = 11 : i64} {
  func.func @_area_attention_kernel(%arg0: i32, %arg1: memref<1x32x256xf32, #tpu.memory_space<vmem>>, %arg2: memref<4x32xbf16, #tpu.memory_space<vmem>>, %arg3: memref<4x1xf32, #tpu.memory_space<vmem>>, %arg4: memref<9x4xf32, #tpu.memory_space<vmem>>, %arg5: memref<1xf32, #tpu.memory_space<smem>>, %arg6: memref<1x32x256xf32, #tpu.memory_space<vmem>>, %arg7: memref<9x512xf32, #tpu.memory_space<vmem>>) attributes {dimension_semantics = [#tpu.dimension_semantics<parallel>], iteration_bounds = array<i64: 2>, scalar_prefetch = 0 : i64, scratch_operands = 1 : i64, tpu.core_type = #tpu.core_type<tc>, window_params = [{transform_indices = @transform_0, window_bounds = array<i64: 1, 32, 256>}, {pipeline_mode = #tpu.pipeline_mode<synchronous>, transform_indices = @transform_1, window_bounds = array<i64: 4, 32>}, {pipeline_mode = #tpu.pipeline_mode<synchronous>, transform_indices = @transform_2, window_bounds = array<i64: 4, 1>}, {pipeline_mode = #tpu.pipeline_mode<synchronous>, transform_indices = @transform_3, window_bounds = array<i64: 9, 4>}, {transform_indices = @transform_4, window_bounds = array<i64: 1>}, {transform_indices = @transform_5, window_bounds = array<i64: 1, 32, 256>}]} {
    %c0 = arith.constant 0 : index
    %c0_0 = arith.constant 0 : index
    %c0_1 = arith.constant 0 : index
    %0 = vector.load %arg1[%c0, %c0_0, %c0_1] : memref<1x32x256xf32, #tpu.memory_space<vmem>>, vector<1x32x256xf32>
    %1 = vector.shape_cast %0 : vector<1x32x256xf32> to vector<32x256xf32>
    %c0_2 = arith.constant 0 : index
    %c0_3 = arith.constant 0 : index
    %2 = vector.load %arg2[%c0_2, %c0_3] : memref<4x32xbf16, #tpu.memory_space<vmem>>, vector<4x32xbf16>
    %3 = arith.truncf %1 : vector<32x256xf32> to vector<32x256xbf16>
    %cst = arith.constant dense<0.000000e+00> : vector<4x256xf32>
    %4 = tpu.matmul %2, %3, %cst {dimension_numbers = #tpu.dot_dimension_numbers<[1], [0], [0], [1], [0, 0, 1, 1], [], []>} : vector<4x32xbf16>, vector<32x256xbf16>, vector<4x256xf32> -> vector<4x256xf32>
    %c0_4 = arith.constant 0 : index
    %c0_5 = arith.constant 0 : index
    %5 = vector.load %arg3[%c0_4, %c0_5] : memref<4x1xf32, #tpu.memory_space<vmem>>, vector<4x1xf32>
    %6 = vector.broadcast %5 : vector<4x1xf32> to vector<4x256xf32>
    %7 = arith.addf %4, %6 : vector<4x256xf32>
    %cst_6 = arith.constant 0.000000e+00 : f32
    %8 = vector.broadcast %cst_6 : f32 to vector<4x256xf32>
    %9 = arith.maximumf %7, %8 : vector<4x256xf32>
    %c0_7 = arith.constant 0 : index
    %c0_8 = arith.constant 0 : index
    %10 = vector.load %arg4[%c0_7, %c0_8] : memref<9x4xf32, #tpu.memory_space<vmem>>, vector<9x4xf32>
    %cst_9 = arith.constant dense<0.000000e+00> : vector<9x256xf32>
    %11 = tpu.matmul %10, %9, %cst_9 {dimension_numbers = #tpu.dot_dimension_numbers<[1], [0], [0], [1], [0, 0, 1, 1], [], []>} : vector<9x4xf32>, vector<4x256xf32>, vector<9x256xf32> -> vector<9x256xf32>
    %c0_10 = arith.constant 0 : index
    %c128 = arith.constant 128 : index
    %12 = vector.load %arg7[%c0_10, %c128] : memref<9x512xf32, #tpu.memory_space<vmem>>, vector<9x256xf32>
    tpu.vector_store %arg7[%c0_10, %c128], %11 {strides = array<i32>} : memref<9x512xf32, #tpu.memory_space<vmem>>, vector<9x256xf32>,
    %13 = tpu.iota {dimensions = array<i32: 1>} : vector<1x256xi32>
    %c16_i32 = arith.constant 16 : i32
    %c0_i32 = arith.constant 0 : i32
    %14 = arith.cmpi eq, %c16_i32, %c0_i32 : i32
    %c1_i32 = arith.constant 1 : i32
    %15 = arith.select %14, %c1_i32, %c16_i32 : i32
    %16 = vector.broadcast %15 : i32 to vector<1x256xi32>
    %17 = arith.remsi %13, %16 : vector<1x256xi32>
    %c0_i32_11 = arith.constant 0 : i32
    %18 = vector.broadcast %c0_i32_11 : i32 to vector<1x256xi32>
    %19 = arith.cmpi ne, %17, %18 : vector<1x256xi32>
    %c0_i32_12 = arith.constant 0 : i32
    %20 = vector.broadcast %c0_i32_12 : i32 to vector<1x256xi32>
    %21 = arith.cmpi slt, %17, %20 : vector<1x256xi32>
    %c0_i32_13 = arith.constant 0 : i32
    %22 = arith.cmpi slt, %15, %c0_i32_13 : i32
    %23 = vector.broadcast %22 : i1 to vector<1x256xi1>
    %24 = vector.broadcast %23 : vector<1x256xi1> to vector<1x256xi1>
    %25 = arith.xori %21, %24 : vector<1x256xi1>
    %26 = arith.andi %25, %19 : vector<1x256xi1>
    %27 = vector.broadcast %15 : i32 to vector<1x256xi32>
    %28 = arith.addi %17, %27 : vector<1x256xi32>
    %29 = arith.select %26, %28, %17 : vector<1x256xi1>, vector<1x256xi32>
    %c16_i32_14 = arith.constant 16 : i32
    %30 = vector.broadcast %c16_i32_14 : i32 to vector<1x256xi32>
    %31 = arith.cmpi sge, %13, %30 : vector<1x256xi32>
    %c240_i32 = arith.constant 240 : i32
    %32 = vector.broadcast %c240_i32 : i32 to vector<1x256xi32>
    %33 = arith.cmpi slt, %13, %32 : vector<1x256xi32>
    %c1_i32_15 = arith.constant 1 : i32
    %34 = vector.broadcast %c1_i32_15 : i32 to vector<1x256xi32>
    %35 = arith.cmpi sge, %29, %34 : vector<1x256xi32>
    %c14_i32 = arith.constant 14 : i32
    %36 = vector.broadcast %c14_i32 : i32 to vector<1x256xi32>
    %37 = arith.cmpi sle, %29, %36 : vector<1x256xi32>
    %c0_16 = arith.constant 0 : index
    %38 = memref.load %arg5[%c0_16] : memref<1xf32, #tpu.memory_space<smem>>
    %39 = vector.broadcast %38 : f32 to vector<1x256xf32>
    %c0_17 = arith.constant 0 : index
    %c111 = arith.constant 111 : index
    %40 = vector.load %arg7[%c0_17, %c111] : memref<9x512xf32, #tpu.memory_space<vmem>>, vector<1x256xf32>
    %41 = arith.andi %31, %35 : vector<1x256xi1>
    %cst_18 = arith.constant 0.000000e+00 : f32
    %42 = vector.broadcast %cst_18 : f32 to vector<1x256xf32>
    %43 = arith.select %41, %40, %42 : vector<1x256xi1>, vector<1x256xf32>
    %44 = arith.addf %39, %43 : vector<1x256xf32>
    %c1 = arith.constant 1 : index
    %c112 = arith.constant 112 : index
    %45 = vector.load %arg7[%c1, %c112] : memref<9x512xf32, #tpu.memory_space<vmem>>, vector<1x256xf32>
    %cst_19 = arith.constant 0.000000e+00 : f32
    %46 = vector.broadcast %cst_19 : f32 to vector<1x256xf32>
    %47 = arith.select %31, %45, %46 : vector<1x256xi1>, vector<1x256xf32>
    %48 = arith.addf %44, %47 : vector<1x256xf32>
    %c2 = arith.constant 2 : index
    %c113 = arith.constant 113 : index
    %49 = vector.load %arg7[%c2, %c113] : memref<9x512xf32, #tpu.memory_space<vmem>>, vector<1x256xf32>
    %50 = arith.andi %31, %37 : vector<1x256xi1>
    %cst_20 = arith.constant 0.000000e+00 : f32
    %51 = vector.broadcast %cst_20 : f32 to vector<1x256xf32>
    %52 = arith.select %50, %49, %51 : vector<1x256xi1>, vector<1x256xf32>
    %53 = arith.addf %48, %52 : vector<1x256xf32>
    %c3 = arith.constant 3 : index
    %c127 = arith.constant 127 : index
    %54 = vector.load %arg7[%c3, %c127] : memref<9x512xf32, #tpu.memory_space<vmem>>, vector<1x256xf32>
    %cst_21 = arith.constant 0.000000e+00 : f32
    %55 = vector.broadcast %cst_21 : f32 to vector<1x256xf32>
    %56 = arith.select %35, %54, %55 : vector<1x256xi1>, vector<1x256xf32>
    %57 = arith.addf %53, %56 : vector<1x256xf32>
    %c4 = arith.constant 4 : index
    %c128_22 = arith.constant 128 : index
    %58 = vector.load %arg7[%c4, %c128_22] : memref<9x512xf32, #tpu.memory_space<vmem>>, vector<1x256xf32>
    %59 = arith.addf %57, %58 : vector<1x256xf32>
    %c5 = arith.constant 5 : index
    %c129 = arith.constant 129 : index
    %60 = vector.load %arg7[%c5, %c129] : memref<9x512xf32, #tpu.memory_space<vmem>>, vector<1x256xf32>
    %cst_23 = arith.constant 0.000000e+00 : f32
    %61 = vector.broadcast %cst_23 : f32 to vector<1x256xf32>
    %62 = arith.select %37, %60, %61 : vector<1x256xi1>, vector<1x256xf32>
    %63 = arith.addf %59, %62 : vector<1x256xf32>
    %c6 = arith.constant 6 : index
    %c143 = arith.constant 143 : index
    %64 = vector.load %arg7[%c6, %c143] : memref<9x512xf32, #tpu.memory_space<vmem>>, vector<1x256xf32>
    %65 = arith.andi %33, %35 : vector<1x256xi1>
    %cst_24 = arith.constant 0.000000e+00 : f32
    %66 = vector.broadcast %cst_24 : f32 to vector<1x256xf32>
    %67 = arith.select %65, %64, %66 : vector<1x256xi1>, vector<1x256xf32>
    %68 = arith.addf %63, %67 : vector<1x256xf32>
    %c7 = arith.constant 7 : index
    %c144 = arith.constant 144 : index
    %69 = vector.load %arg7[%c7, %c144] : memref<9x512xf32, #tpu.memory_space<vmem>>, vector<1x256xf32>
    %cst_25 = arith.constant 0.000000e+00 : f32
    %70 = vector.broadcast %cst_25 : f32 to vector<1x256xf32>
    %71 = arith.select %33, %69, %70 : vector<1x256xi1>, vector<1x256xf32>
    %72 = arith.addf %68, %71 : vector<1x256xf32>
    %c8 = arith.constant 8 : index
    %c145 = arith.constant 145 : index
    %73 = vector.load %arg7[%c8, %c145] : memref<9x512xf32, #tpu.memory_space<vmem>>, vector<1x256xf32>
    %74 = arith.andi %33, %37 : vector<1x256xi1>
    %cst_26 = arith.constant 0.000000e+00 : f32
    %75 = vector.broadcast %cst_26 : f32 to vector<1x256xf32>
    %76 = arith.select %74, %73, %75 : vector<1x256xi1>, vector<1x256xf32>
    %77 = arith.addf %72, %76 : vector<1x256xf32>
    %78 = arith.negf %77 : vector<1x256xf32>
    %79 = math.exp %78 : vector<1x256xf32>
    %cst_27 = arith.constant 1.000000e+00 : f32
    %80 = vector.broadcast %cst_27 : f32 to vector<1x256xf32>
    %81 = arith.addf %80, %79 : vector<1x256xf32>
    %82 = arith.divf %80, %81 : vector<1x256xf32>
    %83 = vector.broadcast %82 : vector<1x256xf32> to vector<32x256xf32>
    %84 = arith.mulf %1, %83 : vector<32x256xf32>
    %c0_28 = arith.constant 0 : index
    %c0_29 = arith.constant 0 : index
    %c0_30 = arith.constant 0 : index
    %85 = vector.load %arg6[%c0_28, %c0_29, %c0_30] : memref<1x32x256xf32, #tpu.memory_space<vmem>>, vector<1x32x256xf32>
    %86 = vector.shape_cast %85 : vector<1x32x256xf32> to vector<32x256xf32>
    %87 = vector.shape_cast %84 : vector<32x256xf32> to vector<1x32x256xf32>
    tpu.vector_store %arg6[%c0_28, %c0_29, %c0_30], %87 {strides = array<i32>} : memref<1x32x256xf32, #tpu.memory_space<vmem>>, vector<1x32x256xf32>,
    return
  }
  func.func @transform_0(%arg0: i32) -> (i32, i32, i32) {
    %c0_i32 = arith.constant 0 : i32
    %c0_i32_0 = arith.constant 0 : i32
    %c0_i32_1 = arith.constant 0 : i32
    return %arg0, %c0_i32, %c0_i32_0 : i32, i32, i32
  }
  func.func @transform_1(%arg0: i32) -> (i32, i32) {
    %c0_i32 = arith.constant 0 : i32
    %c0_i32_0 = arith.constant 0 : i32
    %c0_i32_1 = arith.constant 0 : i32
    return %c0_i32, %c0_i32_0 : i32, i32
  }
  func.func @transform_2(%arg0: i32) -> (i32, i32) {
    %c0_i32 = arith.constant 0 : i32
    %c0_i32_0 = arith.constant 0 : i32
    %c0_i32_1 = arith.constant 0 : i32
    return %c0_i32, %c0_i32_0 : i32, i32
  }
  func.func @transform_3(%arg0: i32) -> (i32, i32) {
    %c0_i32 = arith.constant 0 : i32
    %c0_i32_0 = arith.constant 0 : i32
    %c0_i32_1 = arith.constant 0 : i32
    return %c0_i32, %c0_i32_0 : i32, i32
  }
  func.func @transform_4(%arg0: i32) -> i32 {
    %c0_i32 = arith.constant 0 : i32
    %c0_i32_0 = arith.constant 0 : i32
    return %c0_i32 : i32
  }
  func.func @transform_5(%arg0: i32) -> (i32, i32, i32) {
    %c0_i32 = arith.constant 0 : i32
    %c0_i32_0 = arith.constant 0 : i32
    %c0_i32_1 = arith.constant 0 : i32
    return %arg0, %c0_i32, %c0_i32_0 : i32, i32, i32
  }
}

</mosaic_0001>

<llo_original>
// kernel: area_attention.1
$region0: #{area_attention.1}
  #allocation0 [shape = 'u32[]', space=smem, size = 0x4, offset = 0x4, fixed_abs, tag = 'smem constant byte address 0x4 - core index']
  #allocation1 [shape = 'u32[72,128]{1,0:T(1,128)}', space=vmem, size = 0x9000, scoped, tag = 'internal scratch']
  #allocation2 [shape = 'f32[9,512]{1,0:T(8,128)}', space=vmem, size = 0x8000, scoped, tag = 'scratch operand']
  #allocation3 [shape = 'f32[1]{0:T(128)S(6)}', space=smem, size = 0x200, scoped, tag = 'scoped memory for area_attention.1']
  %s0 = inlined_call_operand.vmem [shape: f32[2,32,256], index: 0, kind: input, shape index: {}]
  %s1 = inlined_call_operand.vmem [shape: bf16[4,32], index: 1, kind: input, shape index: {}]
  %s2 = inlined_call_operand.vmem [shape: f32[4,1], index: 2, kind: input, shape index: {}]
  %s3 = inlined_call_operand.vmem [shape: f32[9,4], index: 3, kind: input, shape index: {}]
  %s4 = inlined_call_operand.<no memory space> [shape: f32[1], index: 4, kind: input, shape index: {}]
  %s5 = inlined_call_operand.vmem [shape: f32[2,32,256], index: 5, kind: output, shape index: {}]
  %s6 = sld [smem:[#allocation0]]
  $region53: #{area_attention.1} parent=0
    _
  %s8 = ssub.s32 1, %s6
  %s9 = scalar_select 0, %s8, %s6
  %10 = sst [smem:[#allocation3]] %s4
  loop: start=0, step=1, limit=4
  $region2: #{area_attention.1} parent=0 // loop_pre_header
    _
  $region3: #{area_attention.1} parent=0 // loop_header
    %s12 = sphi 0, %s16
    %p13 = scmp.ge.s32.totalorder %s12, 4
    %s22 = sphi 0, %s24
    %s25 = sphi 0, %s22
    %s26 = sphi 0, %s25
    %s42 = sphi 0, %s26
    %s46 = sphi 0, %s46
    %s48 = sphi 0, %s46
    %s49 = sphi 0, %s48
    %s63 = sphi 0, %s49
    %s67 = sphi 0, %s67
    %s69 = sphi 0, %s67
    %s70 = sphi 0, %s69
    %s84 = sphi 0, %s70
    %s88 = sphi 0, %s88
    %s90 = sphi 0, %s88
    %s91 = sphi 0, %s90
    %s105 = sphi 0, %s91
    %s109 = sphi 0, %s109
    %s111 = sphi 0, %s109
    %s112 = sphi 0, %s111
    %s126 = sphi 0, %s112
    %s132 = sphi 0, %s134
    %s135 = sphi 0, %s132
    %s136 = sphi 0, %s135
    %s152 = sphi 0, %s136
  $region4: #{area_attention.1} parent=0 // loop_header_branch
    %15 = sbr.rel (%p13) target = $region8
  $region5: #{area_attention.1} parent=0 // loop_body
    %s17 = ssub.s32 %s12, 1
    %s18 = ssub.s32 %s12, 2
    %s19 = sadd.s32 %s12, 1
    %s20 = ssub.s32 %s12, %s19
    %p21 = scmp.eq.s32.totalorder %s20, 0
    %s23 = sadd.s32 %s22, 1
    %s24 = scalar_select %p21, %s22, %s23
    %p27 = pneg %p21
    %p28 = scmp.eq.s32.totalorder %s12, 1
    %p29 = por %p27, %p28
    %p30 = scmp.ne.s32.totalorder %s22, %s25
    %p31 = scmp.eq.s32.totalorder %s12, 0
    %p32 = por %p30, %p31
    %p33 = scmp.ne.s32.totalorder %s22, %s25
    %p34 = scmp.eq.s32.totalorder %s17, 1
    %p35 = por %p33, %p34
    %p36 = scmp.ne.s32.totalorder %s25, %s26
    %p37 = scmp.eq.s32.totalorder %s17, 0
    %p38 = por %p36, %p37
    %p39 = scmp.ne.s32.totalorder %s25, %s26
    %p40 = scmp.eq.s32.totalorder %s18, 1
    %p41 = por %p39, %p40
    %p43 = scmp.ne.s32.totalorder %s26, %s42
    %p44 = scmp.eq.s32.totalorder %s18, 0
    %p45 = por %p43, %p44
    %s47 = sadd.s32 %s46, 1
    %p50 = scmp.eq.s32.totalorder %s12, 1
    %p51 = scmp.ne.s32.totalorder %s46, %s48
    %p52 = scmp.eq.s32.totalorder %s12, 0
    %p53 = por %p51, %p52
    %p54 = scmp.ne.s32.totalorder %s46, %s48
    %p55 = scmp.eq.s32.totalorder %s17, 1
    %p56 = por %p54, %p55
    %p57 = scmp.ne.s32.totalorder %s48, %s49
    %p58 = scmp.eq.s32.totalorder %s17, 0
    %p59 = por %p57, %p58
    %p60 = scmp.ne.s32.totalorder %s48, %s49
    %p61 = scmp.eq.s32.totalorder %s18, 1
    %p62 = por %p60, %p61
    %p64 = scmp.ne.s32.totalorder %s49, %s63
    %p65 = scmp.eq.s32.totalorder %s18, 0
    %p66 = por %p64, %p65
    %s68 = sadd.s32 %s67, 1
    %p71 = scmp.eq.s32.totalorder %s12, 1
    %p72 = scmp.ne.s32.totalorder %s67, %s69
    %p73 = scmp.eq.s32.totalorder %s12, 0
    %p74 = por %p72, %p73
    %p75 = scmp.ne.s32.totalorder %s67, %s69
    %p76 = scmp.eq.s32.totalorder %s17, 1
    %p77 = por %p75, %p76
    %p78 = scmp.ne.s32.totalorder %s69, %s70
    %p79 = scmp.eq.s32.totalorder %s17, 0
    %p80 = por %p78, %p79
    %p81 = scmp.ne.s32.totalorder %s69, %s70
    %p82 = scmp.eq.s32.totalorder %s18, 1
    %p83 = por %p81, %p82
    %p85 = scmp.ne.s32.totalorder %s70, %s84
    %p86 = scmp.eq.s32.totalorder %s18, 0
    %p87 = por %p85, %p86
    %s89 = sadd.s32 %s88, 1
    %p92 = scmp.eq.s32.totalorder %s12, 1
    %p93 = scmp.ne.s32.totalorder %s88, %s90
    %p94 = scmp.eq.s32.totalorder %s12, 0
    %p95 = por %p93, %p94
    %p96 = scmp.ne.s32.totalorder %s88, %s90
    %p97 = scmp.eq.s32.totalorder %s17, 1
    %p98 = por %p96, %p97
    %p99 = scmp.ne.s32.totalorder %s90, %s91
    %p100 = scmp.eq.s32.totalorder %s17, 0
    %p101 = por %p99, %p100
    %p102 = scmp.ne.s32.totalorder %s90, %s91
    %p103 = scmp.eq.s32.totalorder %s18, 1
    %p104 = por %p102, %p103
    %p106 = scmp.ne.s32.totalorder %s91, %s105
    %p107 = scmp.eq.s32.totalorder %s18, 0
    %p108 = por %p106, %p107
    %s110 = sadd.s32 %s109, 1
    %p113 = scmp.eq.s32.totalorder %s12, 1
    %p114 = scmp.ne.s32.totalorder %s109, %s111
    %p115 = scmp.eq.s32.totalorder %s12, 0
    %p116 = por %p114, %p115
    %p117 = scmp.ne.s32.totalorder %s109, %s111
    %p118 = scmp.eq.s32.totalorder %s17, 1
    %p119 = por %p117, %p118
    %p120 = scmp.ne.s32.totalorder %s111, %s112
    %p121 = scmp.eq.s32.totalorder %s17, 0
    %p122 = por %p120, %p121
    %p123 = scmp.ne.s32.totalorder %s111, %s112
    %p124 = scmp.eq.s32.totalorder %s18, 1
    %p125 = por %p123, %p124
    %p127 = scmp.ne.s32.totalorder %s112, %s126
    %p128 = scmp.eq.s32.totalorder %s18, 0
    %p129 = por %p127, %p128
    %s130 = ssub.s32 %s12, %s19
    %p131 = scmp.eq.s32.totalorder %s130, 0
    %s133 = sadd.s32 %s132, 1
    %s134 = scalar_select %p131, %s132, %s133
    %p137 = pneg %p131
    %p138 = scmp.eq.s32.totalorder %s12, 1
    %p139 = por %p137, %p138
    %p140 = scmp.ne.s32.totalorder %s132, %s135
    %p141 = scmp.eq.s32.totalorder %s12, 0
    %p142 = por %p140, %p141
    %p143 = scmp.ne.s32.totalorder %s132, %s135
    %p144 = scmp.eq.s32.totalorder %s17, 1
    %p145 = por %p143, %p144
    %p146 = scmp.ne.s32.totalorder %s135, %s136
    %p147 = scmp.eq.s32.totalorder %s17, 0
    %p148 = por %p146, %p147
    %p149 = scmp.ne.s32.totalorder %s135, %s136
    %p150 = scmp.eq.s32.totalorder %s18, 1
    %p151 = por %p149, %p150
    %p153 = scmp.ne.s32.totalorder %s136, %s152
    %p154 = scmp.eq.s32.totalorder %s18, 0
    %p155 = por %p153, %p154
    %p156 = scmp.le.s32.totalorder 1, %s12
    %p157 = scmp.lt.s32.totalorder %s12, 3
    %p158 = pnand %p156, %p157
    %p159 = pneg %p158
    // Predicated region
    $region9: #{area_attention.1} parent=5 // pred_check
      _
    $region10: #{area_attention.1} parent=5 // pred_check_branch
      %161 = sbr.rel (%p158) target = $region12
    $region11: #{area_attention.1} parent=5 // pred_region
      %s162 = ssub.s32 %s12, 1
      // Predicated region
      $region13: #{area_attention.1} parent=11 // pred_check
        %p163 = pneg %p59
      $region14: #{area_attention.1} parent=11 // pred_check_branch
        %165 = sbr.rel (%p163) target = $region16
      $region15: #{area_attention.1} parent=11 // pred_region
        _
      $region16: #{area_attention.1} parent=11 // pred_fallthru
        _
      // Predicated region
      $region17: #{area_attention.1} parent=11 // pred_check
        %p166 = pneg %p80
      $region18: #{area_attention.1} parent=11 // pred_check_branch
        %168 = sbr.rel (%p166) target = $region20
      $region19: #{area_attention.1} parent=11 // pred_region
        _
      $region20: #{area_attention.1} parent=11 // pred_fallthru
        _
      // Predicated region
      $region21: #{area_attention.1} parent=11 // pred_check
        %p169 = pneg %p101
      $region22: #{area_attention.1} parent=11 // pred_check_branch
        %171 = sbr.rel (%p169) target = $region24
      $region23: #{area_attention.1} parent=11 // pred_region
        _
      $region24: #{area_attention.1} parent=11 // pred_fallthru
        _
      // Predicated region
      $region25: #{area_attention.1} parent=11 // pred_check
        %p172 = pneg %p122
      $region26: #{area_attention.1} parent=11 // pred_check_branch
        %174 = sbr.rel (%p172) target = $region28
      $region27: #{area_attention.1} parent=11 // pred_region
        _
      $region28: #{area_attention.1} parent=11 // pred_fallthru
        _
    $region12: #{area_attention.1} parent=5 // pred_fallthru
      _
    %p175 = scmp.lt.s32.totalorder %s12, 2
    // Predicated region
    $region29: #{area_attention.1} parent=5 // pred_check
      %p176 = pneg %p175
    $region30: #{area_attention.1} parent=5 // pred_check_branch
      %178 = sbr.rel (%p176) target = $region32
    $region31: #{area_attention.1} parent=5 // pred_region
      // Predicated region
      $region33: #{area_attention.1} parent=31 // pred_check
        %p179 = pneg %p32
      $region34: #{area_attention.1} parent=31 // pred_check_branch
        %181 = sbr.rel (%p179) target = $region36
      $region35: #{area_attention.1} parent=31 // pred_region
        %p182 = scmp.lt.s32.totalorder %s12, 1
        %s183 = scalar_select %p182, %s12, 1
        %s184 = smul.addr %s183, 8
        %s185 = smul.addr %s184, 8
        %s186 = scalar_lea.vmem %s0, %s185
      $region36: #{area_attention.1} parent=31 // pred_fallthru
        _
    $region32: #{area_attention.1} parent=5 // pred_fallthru
      _
    %p187 = scmp.le.s32.totalorder 1, %s12
    %p188 = scmp.lt.s32.totalorder %s12, 3
    %p189 = pnand %p187, %p188
    %p190 = pneg %p189
    // Predicated region
    $region37: #{area_attention.1} parent=5 // pred_check
      _
    $region38: #{area_attention.1} parent=5 // pred_check_branch
      %192 = sbr.rel (%p189) target = $region40
    $region39: #{area_attention.1} parent=5 // pred_region
      %s193 = ssub.s32 %s12, 1
      %p194 = scmp.lt.s32.totalorder %s17, 1
      %s195 = scalar_select %p194, %s17, 1
      %s196 = smul.addr %s195, 8
      %s197 = smul.addr %s196, 8
      %s198 = scalar_lea.vmem %s0, %s197
      %p199 = pneg %p38
      %p200 = pneg %p35
      %p201 = pneg %p59
      %p202 = pneg %p56
      %p203 = pneg %p80
      %p204 = pneg %p77
      %p205 = pneg %p101
      %p206 = pneg %p98
      %p207 = pneg %p122
      %p208 = pneg %p119
      %p209 = pneg %p148
      %p210 = pneg %p145
      %p211 = scmp.lt.s32.totalorder %s17, 1
      %s212 = scalar_select %p211, %s17, 1
      %s213 = smul.addr %s212, 8
      %s214 = smul.addr %s213, 8
      %s215 = scalar_lea.vmem %s5, %s214
      %p216 = scmp.lt.s32.totalorder %s17, 1
      %s217 = scalar_select %p216, %s17, 1
      %s218 = smul.addr %s217, 8
      %s219 = smul.addr %s218, 8
      %s220 = scalar_lea.vmem %s0, %s219
      %p221 = scmp.lt.s32.totalorder %s17, 1
      %s222 = scalar_select %p221, %s17, 1
      %s223 = smul.addr %s222, 8
      %s224 = smul.addr %s223, 8
      %s225 = scalar_lea.vmem %s5, %s224
      %v227 = vld [vmem:[%s220] sm:$0xff]
      %v228 = vld [vmem:[%s220 + $0x8] sm:$0xff]
      %v229 = vld [vmem:[%s220 + $0x10] sm:$0xff]
      %v230 = vld [vmem:[%s220 + $0x18] sm:$0xff]
      %v231 = vld [vmem:[%s220 + $0x20] sm:$0xff]
      %v232 = vld [vmem:[%s220 + $0x28] sm:$0xff]
      %v233 = vld [vmem:[%s220 + $0x30] sm:$0xff]
      %v234 = vld [vmem:[%s220 + $0x38] sm:$0xff]
      %v235 = vld [vmem:[%s1] sm:$0x3]
      %v236 = vpack.c.bf16 %v229, %v227
      %v237 = vpack.c.bf16 %v230, %v228
      %v238 = vpack.c.bf16 %v233, %v231
      %v239 = vpack.c.bf16 %v234, %v232
      %v240 = vld [vmem:[%s2] sm:$0xf]
      %242 = vset.pattern.permute.xlu0 0
      %243 = vperm.xlu0 %242, %v240
      %v244 = vpop.permute.xlu0 %243
      %vm246 = vcmask 261120
      %v248 = vsel %vm246, %v235, 0
      %250 = vmatpush.bf16.msra.mxu0 0
      %251 = vmatpush.bf16.msra.mxu0 0
      %252 = vmatpush.bf16.msra.mxu0 0
      %253 = vmatpush.bf16.msra.mxu0 0
      %254 = vmatpush.bf16.msra.mxu0 0
      %255 = vmatpush.bf16.msra.mxu0 0
      %256 = vmatpush.bf16.msra.mxu0 %v238
      %257 = vmatpush.bf16.msra.mxu0 %v236
      %258 = vmatmul.bf16.gmra.mxu0 %v248
      %v259 = vpop.f32.mrf.mxu0
      %v260 = vadd.f32 %v244, %v259
      %v261 = vpop.f32.mrf.mxu0
      %262 = vdwg.mxu0
      %263 = vmatpush.bf16.msra.mxu0 0
      %264 = vmatpush.bf16.msra.mxu0 0
      %265 = vmatpush.bf16.msra.mxu0 0
      %266 = vmatpush.bf16.msra.mxu0 0
      %267 = vmatpush.bf16.msra.mxu0 0
      %268 = vmatpush.bf16.msra.mxu0 0
      %269 = vmatpush.bf16.msra.mxu0 %v239
      %270 = vmatpush.bf16.msra.mxu0 %v237
      %271 = vmatmul.bf16.gmra.mxu0 %v248
      %v272 = vpop.f32.mrf.mxu0
      %v273 = vadd.f32 %v244, %v272
      %v274 = vpop.f32.mrf.mxu0
      %275 = vdwg.mxu0
      %v276 = vmax.f32 %v260, 0.0
      %v277 = vmax.f32 %v273, 0.0
      %v278 = vld [vmem:[%s3] sm:$0xff]
      %v279 = vld [vmem:[%s3 + $0x8] sm:$0x1]
      %vm280 = vcmask 31744
      %v282 = vsel %vm280, %v278, 0
      %v285 = vsel %vm280, %v279, 0
      %vm287 = vcmask 1043456
      %v289 = vsel %vm287, %v276, 0
      %v292 = vsel %vm287, %v277, 0
      %294 = vmatpush.msra.mxu0 0.0
      %295 = vmatpush.msra.mxu0 0.0
      %296 = vmatpush.msra.mxu0 0.0
      %297 = vmatpush.msra.mxu0 0.0
      %298 = vmatpush.msra.mxu0 0.0
      %299 = vmatpush.msra.mxu0 0.0
      %300 = vmatpush.msra.mxu0 0.0
      %301 = vmatpush.msra.mxu0 0.0
      %302 = vmatpush.msra.mxu0 0.0
      %303 = vmatpush.msra.mxu0 0.0
      %304 = vmatpush.msra.mxu0 0.0
      %305 = vmatpush.msra.mxu0 0.0
      %306 = vmatpush.msra.mxu0 0.0
      %307 = vmatpush.msra.mxu0 0.0
      %308 = vmatpush.msra.mxu0 0.0
      %309 = vmatpush.msra.mxu0 %v289
      %310 = vmatmul.f32.gmra.mxu0 %v282
      %v311 = vpop.f32.mrf.mxu0
      %v312 = vadd.f32 0.0, %v311
      %313 = vmatmul.f32.gmra.mxu0 %v285
      %v314 = vpop.f32.mrf.mxu0
      %v315 = vadd.f32 0.0, %v314
      %316 = vdwg.mxu0
      %317 = vmatpush.msra.mxu0 0.0
      %318 = vmatpush.msra.mxu0 0.0
      %319 = vmatpush.msra.mxu0 0.0
      %320 = vmatpush.msra.mxu0 0.0
      %321 = vmatpush.msra.mxu0 0.0
      %322 = vmatpush.msra.mxu0 0.0
      %323 = vmatpush.msra.mxu0 0.0
      %324 = vmatpush.msra.mxu0 0.0
      %325 = vmatpush.msra.mxu0 0.0
      %326 = vmatpush.msra.mxu0 0.0
      %327 = vmatpush.msra.mxu0 0.0
      %328 = vmatpush.msra.mxu0 0.0
      %329 = vmatpush.msra.mxu0 0.0
      %330 = vmatpush.msra.mxu0 0.0
      %331 = vmatpush.msra.mxu0 0.0
      %332 = vmatpush.msra.mxu0 %v292
      %333 = vmatmul.f32.gmra.mxu0 %v282
      %v334 = vpop.f32.mrf.mxu0
      %v335 = vadd.f32 0.0, %v334
      %336 = vmatmul.f32.gmra.mxu0 %v285
      %v337 = vpop.f32.mrf.mxu0
      %v338 = vadd.f32 0.0, %v337
      %339 = vdwg.mxu0
      %340 = vst [vmem:[#allocation2 + $0x8] sm:$0xff] %v312
      %341 = vst [vmem:[#allocation2 + $0x10] sm:$0xff] %v335
      %342 = vst [vmem:[#allocation2 + $0x28] sm:$0x1] %v315
      %343 = vst [vmem:[#allocation2 + $0x30] sm:$0x1] %v338
      %v344 = vlaneseq
      %v345 = vand.u32 %v344, 127
      %v346 = vadd.s32 %v345, 128
      %vm347 = vcmp.lt.s32.totalorder %v345, 0
      %v348 = vsub.s32 0, %v345
      %v349 = vsel %vm347, %v348, %v345
      %v350 = vshrl.u32 %v349, 4
      %v351 = vand.u32 %v349, 15
      %v352 = vsub.s32 0, %v351
      %v353 = vsel %vm347, %v352, %v351
      %vm354 = vcmp.lt.s32.totalorder %v346, 0
      %v355 = vsub.s32 0, %v346
      %v356 = vsel %vm354, %v355, %v346
      %v357 = vshrl.u32 %v356, 4
      %v358 = vand.u32 %v356, 15
      %v359 = vsub.s32 0, %v358
      %v360 = vsel %vm354, %v359, %v358
      %vm361 = vcmp.ne.s32.totalorder %v353, 0
      %vm362 = vcmp.ne.s32.totalorder %v360, 0
      %vm363 = vcmp.lt.s32.totalorder %v353, 0
      %vm364 = vcmp.lt.s32.totalorder %v360, 0
      %vm365 = vmand %vm363, %vm361
      %vm366 = vmand %vm364, %vm362
      %v367 = vadd.s32 %v353, 16
      %v368 = vadd.s32 %v360, 16
      %v369 = vsel %vm365, %v367, %v353
      %v370 = vsel %vm366, %v368, %v360
      %vm371 = vcmp.ge.s32.totalorder %v345, 16
      %vm372 = vcmp.ge.s32.totalorder %v346, 16
      %vm373 = vcmp.lt.s32.totalorder %v345, 240
      %vm374 = vcmp.lt.s32.totalorder %v346, 240
      %vm375 = vcmp.ge.s32.totalorder %v369, 1
      %vm376 = vcmp.ge.s32.totalorder %v370, 1
      %vm377 = vcmp.le.s32.totalorder %v369, 14
      %vm378 = vcmp.le.s32.totalorder %v370, 14
      %s379 = sld [smem:[#allocation3]]
      %v380 = vstv %s379
      %v381 = vld [vmem:[#allocation2] ss:$8 sm:$0x7]
      %vm382 = vmand %vm371, %vm375
      %vm383 = vmand %vm372, %vm376
      %v385 = vperm.slane %v381, 0
      %v386 = vperm.slane %v381, 1
      %v387 = vperm.slane %v381, 2
      %388 = vrot.lane.b32.xlu0 %v385, 17
      %v389 = vpop.permute.xlu0 %388
      %390 = vrot.lane.b32.xlu0 %v386, 17
      %v391 = vpop.permute.xlu0 %390
      %392 = vrot.lane.b32.xlu0 %v387, 17
      %v393 = vpop.permute.xlu0 %392
      %vm394 = vcmask 138240
      %v395 = vsel %vm394, %v389, %v391
      %v396 = vsel %vm394, %v391, %v393
      %v399 = vsel %vm382, %v395, 0.0
      %v400 = vsel %vm383, %v396, 0.0
      %v401 = vadd.f32 %v380, %v399
      %v402 = vadd.f32 %v380, %v400
      %s403 = scalar_lea.vmem [#allocation2], 1
      %v404 = vld [vmem:[%s403] ss:$8 sm:$0x7]
      %v406 = vperm.slane %v404, 0
      %v407 = vperm.slane %v404, 1
      %v408 = vperm.slane %v404, 2
      %409 = vrot.lane.b32.xlu0 %v406, 16
      %v410 = vpop.permute.xlu0 %409
      %411 = vrot.lane.b32.xlu0 %v407, 16
      %v412 = vpop.permute.xlu0 %411
      %413 = vrot.lane.b32.xlu0 %v408, 16
      %v414 = vpop.permute.xlu0 %413
      %vm415 = vcmask 130048
      %v416 = vsel %vm415, %v410, %v412
      %v417 = vsel %vm415, %v412, %v414
      %v420 = vsel %vm371, %v416, 0.0
      %v421 = vsel %vm372, %v417, 0.0
      %v422 = vadd.f32 %v401, %v420
      %v423 = vadd.f32 %v402, %v421
      %s424 = scalar_lea.vmem [#allocation2], 2
      %v425 = vld [vmem:[%s424] ss:$8 sm:$0x7]
      %vm426 = vmand %vm371, %vm377
      %vm427 = vmand %vm372, %vm378
      %v429 = vperm.slane %v425, 0
      %v430 = vperm.slane %v425, 1
      %v431 = vperm.slane %v425, 2
      %432 = vrot.lane.b32.xlu0 %v429, 15
      %v433 = vpop.permute.xlu0 %432
      %434 = vrot.lane.b32.xlu0 %v430, 15
      %v435 = vpop.permute.xlu0 %434
      %436 = vrot.lane.b32.xlu0 %v431, 15
      %v437 = vpop.permute.xlu0 %436
      %vm438 = vcmask 121856
      %v439 = vsel %vm438, %v433, %v435
      %v440 = vsel %vm438, %v435, %v437
      %v443 = vsel %vm426, %v439, 0.0
      %v444 = vsel %vm427, %v440, 0.0
      %v445 = vadd.f32 %v422, %v443
      %v446 = vadd.f32 %v423, %v444
      %s447 = scalar_lea.vmem [#allocation2], 3
      %v448 = vld [vmem:[%s447] ss:$8 sm:$0x7]
      %v450 = vperm.slane %v448, 0
      %v451 = vperm.slane %v448, 1
      %v452 = vperm.slane %v448, 2
      %453 = vrot.lane.b32.xlu0 %v450, 1
      %v454 = vpop.permute.xlu0 %453
      %455 = vrot.lane.b32.xlu0 %v451, 1
      %v456 = vpop.permute.xlu0 %455
      %457 = vrot.lane.b32.xlu0 %v452, 1
      %v458 = vpop.permute.xlu0 %457
      %vm459 = vcmask 7168
      %v460 = vsel %vm459, %v454, %v456
      %v461 = vsel %vm459, %v456, %v458
      %v464 = vsel %vm375, %v460, 0.0
      %v465 = vsel %vm376, %v461, 0.0
      %v466 = vadd.f32 %v445, %v464
      %v467 = vadd.f32 %v446, %v465
      %s468 = scalar_lea.vmem [#allocation2], 12
      %v469 = vld [vmem:[%s468] ss:$8 sm:$0x3]
      %v471 = vperm.slane %v469, 0
      %v472 = vperm.slane %v469, 1
      %v475 = vadd.f32 %v466, %v471
      %v476 = vadd.f32 %v467, %v472
      %s477 = scalar_lea.vmem [#allocation2], 13
      %v478 = vld [vmem:[%s477] ss:$8 sm:$0x7]
      %v480 = vperm.slane %v478, 0
      %v481 = vperm.slane %v478, 1
      %v482 = vperm.slane %v478, 2
      %483 = vrot.lane.b32.xlu0 %v480, 127
      %v484 = vpop.permute.xlu0 %483
      %485 = vrot.lane.b32.xlu0 %v481, 127
      %v486 = vpop.permute.xlu0 %485
      %487 = vrot.lane.b32.xlu0 %v482, 127
      %v488 = vpop.permute.xlu0 %487
      %vm489 = vcmask 1039360
      %v490 = vsel %vm489, %v484, %v486
      %v491 = vsel %vm489, %v486, %v488
      %v494 = vsel %vm377, %v490, 0.0
      %v495 = vsel %vm378, %v491, 0.0
      %v496 = vadd.f32 %v475, %v494
      %v497 = vadd.f32 %v476, %v495
      %s498 = scalar_lea.vmem [#allocation2], 14
      %v499 = vld [vmem:[%s498] ss:$8 sm:$0x7]
      %vm500 = vmand %vm373, %vm375
      %vm501 = vmand %vm374, %vm376
      %v503 = vperm.slane %v499, 0
      %v504 = vperm.slane %v499, 1
      %v505 = vperm.slane %v499, 2
      %506 = vrot.lane.b32.xlu0 %v503, 113
      %v507 = vpop.permute.xlu0 %506
      %508 = vrot.lane.b32.xlu0 %v504, 113
      %v509 = vpop.permute.xlu0 %508
      %510 = vrot.lane.b32.xlu0 %v505, 113
      %v511 = vpop.permute.xlu0 %510
      %vm512 = vcmask 924672
      %v513 = vsel %vm512, %v507, %v509
      %v514 = vsel %vm512, %v509, %v511
      %v517 = vsel %vm500, %v513, 0.0
      %v518 = vsel %vm501, %v514, 0.0
      %v519 = vadd.f32 %v496, %v517
      %v520 = vadd.f32 %v497, %v518
      %s521 = scalar_lea.vmem [#allocation2], 15
      %v522 = vld [vmem:[%s521] ss:$8 sm:$0x7]
      %v524 = vperm.slane %v522, 0
      %v525 = vperm.slane %v522, 1
      %v526 = vperm.slane %v522, 2
      %527 = vrot.lane.b32.xlu0 %v524, 112
      %v528 = vpop.permute.xlu0 %527
      %529 = vrot.lane.b32.xlu0 %v525, 112
      %v530 = vpop.permute.xlu0 %529
      %531 = vrot.lane.b32.xlu0 %v526, 112
      %v532 = vpop.permute.xlu0 %531
      %vm533 = vcmask 916480
      %v534 = vsel %vm533, %v528, %v530
      %v535 = vsel %vm533, %v530, %v532
      %v538 = vsel %vm373, %v534, 0.0
      %v539 = vsel %vm374, %v535, 0.0
      %v540 = vadd.f32 %v519, %v538
      %v541 = vadd.f32 %v520, %v539
      %s542 = scalar_lea.vmem [#allocation2], 40
      %v543 = vld [vmem:[%s542] ss:$8 sm:$0x7]
      %vm544 = vmand %vm373, %vm377
      %vm545 = vmand %vm374, %vm378
      %v547 = vperm.slane %v543, 0
      %v548 = vperm.slane %v543, 1
      %v549 = vperm.slane %v543, 2
      %550 = vrot.lane.b32.xlu0 %v547, 111
      %v551 = vpop.permute.xlu0 %550
      %552 = vrot.lane.b32.xlu0 %v548, 111
      %v553 = vpop.permute.xlu0 %552
      %554 = vrot.lane.b32.xlu0 %v549, 111
      %v555 = vpop.permute.xlu0 %554
      %vm556 = vcmask 908288
      %v557 = vsel %vm556, %v551, %v553
      %v558 = vsel %vm556, %v553, %v555
      %v561 = vsel %vm544, %v557, 0.0
      %v562 = vsel %vm545, %v558, 0.0
      %v563 = vadd.f32 %v540, %v561
      %v564 = vadd.f32 %v541, %v562
      %v565 = vxor.u32 %v563, 2147483648
      %v566 = vxor.u32 %v564, 2147483648
      %v567 = vmul.f32 %v565, 1.442695
      %v568 = vpow.pop %v567
      %v569 = vmul.f32 %v566, 1.442695
      %v570 = vpow.pop %v569
      %v571 = vadd.f32 %v568, 1.0
      %v572 = vadd.f32 %v570, 1.0
      %v573 = vrcp.pop %v571
      %v574 = vmul.f32 %v571, %v573
      %v575 = vsub.f32 1.0, %v574
      %v576 = vmul.f32 %v573, %v575
      %v577 = vadd.f32 %v573, %v576
      %vm578 = vweird.f32 %v571
      %vm579 = vweird.f32 %v573
      %vm580 = vmor %vm578, %vm579
      %v581 = vsel %vm580, %v573, %v577
      %v582 = vand.u32 2147483647, %v571
      %vm583 = vcmp.eq.f32.partialorder %v582, 8.507059e+37
      %v584 = vand.u32 %v571, 2147483648
      %v585 = vor.u32 1.1754944e-38, %v584
      %v586 = vsel %vm583, %v585, %v581
      %v587 = vmul.f32 1.0, %v586
      %v588 = vrcp.pop %v572
      %v589 = vmul.f32 %v572, %v588
      %v590 = vsub.f32 1.0, %v589
      %v591 = vmul.f32 %v588, %v590
      %v592 = vadd.f32 %v588, %v591
      %vm593 = vweird.f32 %v572
      %vm594 = vweird.f32 %v588
      %vm595 = vmor %vm593, %vm594
      %v596 = vsel %vm595, %v588, %v592
      %v597 = vand.u32 2147483647, %v572
      %vm598 = vcmp.eq.f32.partialorder %v597, 8.507059e+37
      %v599 = vand.u32 %v572, 2147483648
      %v600 = vor.u32 1.1754944e-38, %v599
      %v601 = vsel %vm598, %v600, %v596
      %v602 = vmul.f32 1.0, %v601
      %v603 = vperm.slane %v587, 0
      %v604 = vperm.slane %v602, 0
      %v605 = vmul.f32 %v227, %v603
      %v606 = vmul.f32 %v228, %v604
      %v607 = vmul.f32 %v229, %v603
      %v608 = vmul.f32 %v230, %v604
      %v609 = vmul.f32 %v231, %v603
      %v610 = vmul.f32 %v232, %v604
      %v611 = vmul.f32 %v233, %v603
      %v612 = vmul.f32 %v234, %v604
      %613 = vst [vmem:[%s225] sm:$0xff] %v605
      %614 = vst [vmem:[%s225 + $0x8] sm:$0xff] %v606
      %615 = vst [vmem:[%s225 + $0x10] sm:$0xff] %v607
      %616 = vst [vmem:[%s225 + $0x18] sm:$0xff] %v608
      %617 = vst [vmem:[%s225 + $0x20] sm:$0xff] %v609
      %618 = vst [vmem:[%s225 + $0x28] sm:$0xff] %v610
      %619 = vst [vmem:[%s225 + $0x30] sm:$0xff] %v611
      %620 = vst [vmem:[%s225 + $0x38] sm:$0xff] %v612
      %p621 = scmp.lt.s32.totalorder %s17, 1
      %s622 = scalar_select %p621, %s17, 1
      %s623 = smul.addr %s622, 8
      %s624 = smul.addr %s623, 8
      %s625 = scalar_lea.vmem %s5, %s624
      // Predicated region
      $region41: #{area_attention.1} parent=39 // pred_check
        %p626 = pneg %p145
      $region42: #{area_attention.1} parent=39 // pred_check_branch
        %628 = sbr.rel (%p626) target = $region44
      $region43: #{area_attention.1} parent=39 // pred_region
        _
      $region44: #{area_attention.1} parent=39 // pred_fallthru
        _
    $region40: #{area_attention.1} parent=5 // pred_fallthru
      _
    %p629 = scmp.le.s32.totalorder 2, %s12
    // Predicated region
    $region45: #{area_attention.1} parent=5 // pred_check
      %p630 = pneg %p629
    $region46: #{area_attention.1} parent=5 // pred_check_branch
      %632 = sbr.rel (%p630) target = $region48
    $region47: #{area_attention.1} parent=5 // pred_region
      %s633 = ssub.s32 %s12, 2
      // Predicated region
      $region49: #{area_attention.1} parent=47 // pred_check
        %p634 = pneg %p151
      $region50: #{area_attention.1} parent=47 // pred_check_branch
        %636 = sbr.rel (%p634) target = $region52
      $region51: #{area_attention.1} parent=47 // pred_region
        %p637 = scmp.lt.s32.totalorder %s18, 1
        %s638 = scalar_select %p637, %s18, 1
        %s639 = smul.addr %s638, 8
        %s640 = smul.addr %s639, 8
        %s641 = scalar_lea.vmem %s5, %s640
      $region52: #{area_attention.1} parent=47 // pred_fallthru
        _
    $region48: #{area_attention.1} parent=5 // pred_fallthru
      _
  $region6: #{area_attention.1} parent=0 // loop_footer
    %s16 = sadd.s32 1, %s12
  $region7: #{area_attention.1} parent=0 // loop_footer_branch
    %11 = sbr.rel target = $region3
  $region8: #{area_attention.1} parent=0 // loop_exit
    _

</llo_original>
